<compile_context>
chip_gen: v5e
topology: v5e:2x2
jax: 0.10.0
libtpu: 0.0.40
codegen_flags: <defaults>
</compile_context>

<pallas_src>
import jax
import jax.numpy as jnp
from jax import lax
from jax.experimental import pallas as pl
from jax.experimental.pallas import tpu as pltpu


def _adapter_kernel(x_ref, w_ref, b_ref, o_ref):
    # x_ref: [Q, C] VMEM  (last decoder layer, one batch element; L and B squeezed)
    # w_ref: [E, Q] VMEM  (nn.Linear weight, MXU-natural lhs orientation)
    # b_ref: [E, 1] VMEM  (f32 bias column)
    # o_ref: [E, C] VMEM  (batch element b of the [B, E, C] output)
    y = lax.dot_general(
        w_ref[...], x_ref[...],
        dimension_numbers=(((1,), (0,)), ((), ())),
        preferred_element_type=jnp.float32,
    )                                                   # [E, C] f32 accumulate
    # Single vectorized bias add + one dense slab store (lane-dense / unmasked
    # when C is a multiple of 128, e.g. real DETR C=256; still correct otherwise).
    o_ref[...] = (y + b_ref[...]).astype(o_ref.dtype)


def detr_adapter_forward(embeds, weight, bias):
    """embeds: [L, B, Q, C]; weight: [E, Q]; bias: [E]. Returns [B, E, C]."""
    L, B, Q, C = embeds.shape
    E, Qw = weight.shape
    assert Qw == Q

    bias_col = bias.astype(jnp.float32).reshape(E, 1)

    x_bytes = embeds.dtype.itemsize
    w_bytes = weight.dtype.itemsize
    cost = pl.CostEstimate(
        flops=2 * E * Q * B * C,
        transcendentals=0,
        bytes_accessed=(B * Q * C * x_bytes      # last-layer activations read
                        + E * Q * w_bytes        # weight read
                        + E * 4                  # bias read
                        + B * E * C * x_bytes),  # output write
    )

    return pl.pallas_call(
        _adapter_kernel,
        out_shape=jax.ShapeDtypeStruct((B, E, C), embeds.dtype),
        grid=(B,),
        in_specs=[
            # Layer L-1 selected directly by the index_map: no wrapper slice,
            # transpose or reshape; each per-b [Q, C] tile is DMA'd from HBM.
            pl.BlockSpec((pl.Squeezed(), pl.Squeezed(), Q, C),
                         lambda b: (L - 1, b, 0, 0)),
            # Same block every grid step -> weight/bias stay resident in VMEM.
            pl.BlockSpec((E, Q), lambda b: (0, 0)),
            pl.BlockSpec((E, 1), lambda b: (0, 0)),
        ],
        out_specs=pl.BlockSpec((pl.Squeezed(), E, C), lambda b: (b, 0, 0)),
        compiler_params=pltpu.CompilerParams(
            dimension_semantics=("parallel",)),
        cost_estimate=cost,
    )(embeds, weight, bias_col)


def init_params(key, num_embeds=1, in_features=100):
    # Deterministic synthetic init mimicking nn.Linear default (uniform +-1/sqrt(fan_in)).
    kw, kb = jax.random.split(key)
    bound = 1.0 / jnp.sqrt(jnp.float32(in_features))
    weight = jax.random.uniform(kw, (num_embeds, in_features), jnp.float32,
                                minval=-bound, maxval=bound)
    bias = jax.random.uniform(kb, (num_embeds,), jnp.float32,
                              minval=-bound, maxval=bound)
    return weight, bias


def _reference(embeds, weight, bias):
    # Pure-JAX reference of the PyTorch semantics.
    x_last = embeds[-1]                                        # [B, Q, C]
    ref = jnp.transpose(x_last, (0, 2, 1)) @ weight.T + bias   # [B, C, E]
    return jnp.transpose(ref, (0, 2, 1))                       # [B, E, C]


if __name__ == "__main__":
    key = jax.random.PRNGKey(0)
    k_emb, k_par = jax.random.split(key)

    # Q=100 is fixed by nn.Linear(100, num_embeds).
    L, B, Q, C = 3, 2, 100, 64

    embeds = jax.random.normal(k_emb, (L, B, Q, C), dtype=jnp.float32)

    # Default module config: num_embeds = 1.
    weight1, bias1 = init_params(k_par, num_embeds=1, in_features=Q)
    out1 = jax.block_until_ready(detr_adapter_forward(embeds, weight1, bias1))
    assert out1.shape == (B, 1, C)
    assert jnp.allclose(out1, _reference(embeds, weight1, bias1),
                        atol=1e-5, rtol=1e-5)

    # Exercise the E > 1 vectorized bias/store path as well.
    weight4, bias4 = init_params(k_par, num_embeds=4, in_features=Q)
    out4 = jax.block_until_ready(detr_adapter_forward(embeds, weight4, bias4))
    assert out4.shape == (B, 4, C)
    assert jnp.allclose(out4, _reference(embeds, weight4, bias4),
                        atol=1e-5, rtol=1e-5)

    print("KERNEL_OK")
</pallas_src>

<mosaic_0001>
module attributes {stable_mosaic.version = 11 : i64} {
  func.func @_adapter_kernel(%arg0: i32, %arg1: memref<1x1x100x64xf32, #tpu.memory_space<vmem>>, %arg2: memref<1x100xf32, #tpu.memory_space<vmem>>, %arg3: memref<1x1xf32, #tpu.memory_space<vmem>>, %arg4: memref<1x1x64xf32, #tpu.memory_space<vmem>>) attributes {dimension_semantics = [#tpu.dimension_semantics<parallel>], iteration_bounds = array<i64: 2>, scalar_prefetch = 0 : i64, scratch_operands = 0 : i64, tpu.core_type = #tpu.core_type<tc>, window_params = [{transform_indices = @transform_0, window_bounds = array<i64: 1, 1, 100, 64>}, {pipeline_mode = #tpu.pipeline_mode<synchronous>, transform_indices = @transform_1, window_bounds = array<i64: 1, 100>}, {pipeline_mode = #tpu.pipeline_mode<synchronous>, transform_indices = @transform_2, window_bounds = array<i64: 1, 1>}, {transform_indices = @transform_3, window_bounds = array<i64: 1, 1, 64>}]} {
    %c0 = arith.constant 0 : index
    %c0_0 = arith.constant 0 : index
    %0 = vector.load %arg2[%c0, %c0_0] : memref<1x100xf32, #tpu.memory_space<vmem>>, vector<1x100xf32>
    %c0_1 = arith.constant 0 : index
    %c0_2 = arith.constant 0 : index
    %c0_3 = arith.constant 0 : index
    %c0_4 = arith.constant 0 : index
    %1 = vector.load %arg1[%c0_1, %c0_2, %c0_3, %c0_4] : memref<1x1x100x64xf32, #tpu.memory_space<vmem>>, vector<1x1x100x64xf32>
    %2 = vector.shape_cast %1 : vector<1x1x100x64xf32> to vector<100x64xf32>
    %cst = arith.constant dense<0.000000e+00> : vector<1x64xf32>
    %3 = tpu.matmul %0, %2, %cst {dimension_numbers = #tpu.dot_dimension_numbers<[1], [0], [0], [1], [0, 0, 1, 1], [], []>} : vector<1x100xf32>, vector<100x64xf32>, vector<1x64xf32> -> vector<1x64xf32>
    %c0_5 = arith.constant 0 : index
    %c0_6 = arith.constant 0 : index
    %4 = vector.load %arg3[%c0_5, %c0_6] : memref<1x1xf32, #tpu.memory_space<vmem>>, vector<1x1xf32>
    %5 = vector.broadcast %4 : vector<1x1xf32> to vector<1x64xf32>
    %6 = arith.addf %3, %5 : vector<1x64xf32>
    %c0_7 = arith.constant 0 : index
    %c0_8 = arith.constant 0 : index
    %c0_9 = arith.constant 0 : index
    %7 = vector.load %arg4[%c0_7, %c0_8, %c0_9] : memref<1x1x64xf32, #tpu.memory_space<vmem>>, vector<1x1x64xf32>
    %8 = vector.shape_cast %7 : vector<1x1x64xf32> to vector<1x64xf32>
    %9 = vector.shape_cast %6 : vector<1x64xf32> to vector<1x1x64xf32>
    tpu.vector_store %arg4[%c0_7, %c0_8, %c0_9], %9 {strides = array<i32>} : memref<1x1x64xf32, #tpu.memory_space<vmem>>, vector<1x1x64xf32>,
    return
  }
  func.func @transform_0(%arg0: i32) -> (i32, i32, i32, i32) {
    %c2_i32 = arith.constant 2 : i32
    %c0_i32 = arith.constant 0 : i32
    %c0_i32_0 = arith.constant 0 : i32
    %c0_i32_1 = arith.constant 0 : i32
    return %c2_i32, %arg0, %c0_i32, %c0_i32_0 : i32, i32, i32, i32
  }
  func.func @transform_1(%arg0: i32) -> (i32, i32) {
    %c0_i32 = arith.constant 0 : i32
    %c0_i32_0 = arith.constant 0 : i32
    %c0_i32_1 = arith.constant 0 : i32
    return %c0_i32, %c0_i32_0 : i32, i32
  }
  func.func @transform_2(%arg0: i32) -> (i32, i32) {
    %c0_i32 = arith.constant 0 : i32
    %c0_i32_0 = arith.constant 0 : i32
    %c0_i32_1 = arith.constant 0 : i32
    return %c0_i32, %c0_i32_0 : i32, i32
  }
  func.func @transform_3(%arg0: i32) -> (i32, i32, i32) {
    %c0_i32 = arith.constant 0 : i32
    %c0_i32_0 = arith.constant 0 : i32
    %c0_i32_1 = arith.constant 0 : i32
    return %arg0, %c0_i32, %c0_i32_0 : i32, i32, i32
  }
}

</mosaic_0001>

<llo_original>
// kernel: tpu_custom_call.1
$region0: #{tpu_custom_call.1}
  #allocation0 [shape = 'u32[]', space=smem, size = 0x4, offset = 0x4, fixed_abs, tag = 'smem constant byte address 0x4 - core index']
  #allocation1 [shape = 'u32[72,128]{1,0:T(1,128)}', space=vmem, size = 0x9000, scoped, tag = 'internal scratch']
  #allocation2 [shape = 'f32[1,1]{1,0:T(1,128)S(1)}', space=vmem, size = 0x200, scoped, tag = 'scoped memory for tpu_custom_call.1']
  %s0 = inlined_call_operand.vmem [shape: f32[3,2,100,64], index: 0, kind: input, shape index: {}]
  %s1 = inlined_call_operand.vmem [shape: f32[1,100], index: 1, kind: input, shape index: {}]
  %s2 = inlined_call_operand.<no memory space> [shape: f32[1,1], index: 2, kind: input, shape index: {}]
  %s3 = inlined_call_operand.hbm [shape: f32[2,1,64], index: 3, kind: output, shape index: {}]
  %s4 = sld [smem:[#allocation0]]
  $region45: #{tpu_custom_call.1} parent=0
    _
  %s6 = ssub.s32 1, %s4
  %s7 = scalar_select 0, %s6, %s4
  %v8 = vstv %s2
  %9 = vst [vmem:[#allocation2] sm:$0x1] %v8
  $region1: #{tpu_custom_call.1} parent=0
    #allocation3 [shape = 'u8[1024]{0}', space=vmem, size = 0x400, scoped, tag = 'output window, operand 0']
    #allocation4 [shape = 's32[2]{0}', space=sflag, size = 0x8, scoped, tag = 'scoped memory for tpu_custom_call.1']
    %10 = vsyncpa [#allocation4], 0
    %s11 = scalar_lea.sflag [#allocation4], 1
    %12 = vsyncpa %s11, 0
    loop: start=0, step=1, limit=4
    $region2: #{tpu_custom_call.1} parent=1 // loop_pre_header
      _
    $region3: #{tpu_custom_call.1} parent=1 // loop_header
      %s14 = sphi 0, %s18
      %p15 = scmp.ge.s32.totalorder %s14, 4
      %s24 = sphi 0, %s26
      %s27 = sphi 0, %s24
      %s28 = sphi 0, %s27
      %s44 = sphi 0, %s28
      %s48 = sphi 0, %s48
      %s50 = sphi 0, %s48
      %s51 = sphi 0, %s50
      %s65 = sphi 0, %s51
      %s69 = sphi 0, %s69
      %s71 = sphi 0, %s69
      %s72 = sphi 0, %s71
      %s86 = sphi 0, %s72
      %s92 = sphi 0, %s94
      %s95 = sphi 0, %s92
      %s96 = sphi 0, %s95
      %s112 = sphi 0, %s96
    $region4: #{tpu_custom_call.1} parent=1 // loop_header_branch
      %17 = sbr.rel (%p15) target = $region8
    $region5: #{tpu_custom_call.1} parent=1 // loop_body
      %s19 = ssub.s32 %s14, 1
      %s20 = ssub.s32 %s14, 2
      %s21 = sadd.s32 %s14, 1
      %s22 = ssub.s32 %s14, %s21
      %p23 = scmp.eq.s32.totalorder %s22, 0
      %s25 = sadd.s32 %s24, 1
      %s26 = scalar_select %p23, %s24, %s25
      %p29 = pneg %p23
      %p30 = scmp.eq.s32.totalorder %s14, 1
      %p31 = por %p29, %p30
      %p32 = scmp.ne.s32.totalorder %s24, %s27
      %p33 = scmp.eq.s32.totalorder %s14, 0
      %p34 = por %p32, %p33
      %p35 = scmp.ne.s32.totalorder %s24, %s27
      %p36 = scmp.eq.s32.totalorder %s19, 1
      %p37 = por %p35, %p36
      %p38 = scmp.ne.s32.totalorder %s27, %s28
      %p39 = scmp.eq.s32.totalorder %s19, 0
      %p40 = por %p38, %p39
      %p41 = scmp.ne.s32.totalorder %s27, %s28
      %p42 = scmp.eq.s32.totalorder %s20, 1
      %p43 = por %p41, %p42
      %p45 = scmp.ne.s32.totalorder %s28, %s44
      %p46 = scmp.eq.s32.totalorder %s20, 0
      %p47 = por %p45, %p46
      %s49 = sadd.s32 %s48, 1
      %p52 = scmp.eq.s32.totalorder %s14, 1
      %p53 = scmp.ne.s32.totalorder %s48, %s50
      %p54 = scmp.eq.s32.totalorder %s14, 0
      %p55 = por %p53, %p54
      %p56 = scmp.ne.s32.totalorder %s48, %s50
      %p57 = scmp.eq.s32.totalorder %s19, 1
      %p58 = por %p56, %p57
      %p59 = scmp.ne.s32.totalorder %s50, %s51
      %p60 = scmp.eq.s32.totalorder %s19, 0
      %p61 = por %p59, %p60
      %p62 = scmp.ne.s32.totalorder %s50, %s51
      %p63 = scmp.eq.s32.totalorder %s20, 1
      %p64 = por %p62, %p63
      %p66 = scmp.ne.s32.totalorder %s51, %s65
      %p67 = scmp.eq.s32.totalorder %s20, 0
      %p68 = por %p66, %p67
      %s70 = sadd.s32 %s69, 1
      %p73 = scmp.eq.s32.totalorder %s14, 1
      %p74 = scmp.ne.s32.totalorder %s69, %s71
      %p75 = scmp.eq.s32.totalorder %s14, 0
      %p76 = por %p74, %p75
      %p77 = scmp.ne.s32.totalorder %s69, %s71
      %p78 = scmp.eq.s32.totalorder %s19, 1
      %p79 = por %p77, %p78
      %p80 = scmp.ne.s32.totalorder %s71, %s72
      %p81 = scmp.eq.s32.totalorder %s19, 0
      %p82 = por %p80, %p81
      %p83 = scmp.ne.s32.totalorder %s71, %s72
      %p84 = scmp.eq.s32.totalorder %s20, 1
      %p85 = por %p83, %p84
      %p87 = scmp.ne.s32.totalorder %s72, %s86
      %p88 = scmp.eq.s32.totalorder %s20, 0
      %p89 = por %p87, %p88
      %s90 = ssub.s32 %s14, %s21
      %p91 = scmp.eq.s32.totalorder %s90, 0
      %s93 = sadd.s32 %s92, 1
      %s94 = scalar_select %p91, %s92, %s93
      %p97 = pneg %p91
      %p98 = scmp.eq.s32.totalorder %s14, 1
      %p99 = por %p97, %p98
      %p100 = scmp.ne.s32.totalorder %s92, %s95
      %p101 = scmp.eq.s32.totalorder %s14, 0
      %p102 = por %p100, %p101
      %p103 = scmp.ne.s32.totalorder %s92, %s95
      %p104 = scmp.eq.s32.totalorder %s19, 1
      %p105 = por %p103, %p104
      %p106 = scmp.ne.s32.totalorder %s95, %s96
      %p107 = scmp.eq.s32.totalorder %s19, 0
      %p108 = por %p106, %p107
      %p109 = scmp.ne.s32.totalorder %s95, %s96
      %p110 = scmp.eq.s32.totalorder %s20, 1
      %p111 = por %p109, %p110
      %p113 = scmp.ne.s32.totalorder %s96, %s112
      %p114 = scmp.eq.s32.totalorder %s20, 0
      %p115 = por %p113, %p114
      %p116 = scmp.le.s32.totalorder 1, %s14
      %p117 = scmp.lt.s32.totalorder %s14, 3
      %p118 = pnand %p116, %p117
      %p119 = pneg %p118
      // Predicated region
      $region9: #{tpu_custom_call.1} parent=5 // pred_check
        _
      $region10: #{tpu_custom_call.1} parent=5 // pred_check_branch
        %121 = sbr.rel (%p118) target = $region12
      $region11: #{tpu_custom_call.1} parent=5 // pred_region
        %s122 = ssub.s32 %s14, 1
        // Predicated region
        $region13: #{tpu_custom_call.1} parent=11 // pred_check
          %p123 = pneg %p61
        $region14: #{tpu_custom_call.1} parent=11 // pred_check_branch
          %125 = sbr.rel (%p123) target = $region16
        $region15: #{tpu_custom_call.1} parent=11 // pred_region
          _
        $region16: #{tpu_custom_call.1} parent=11 // pred_fallthru
          _
        // Predicated region
        $region17: #{tpu_custom_call.1} parent=11 // pred_check
          %p126 = pneg %p82
        $region18: #{tpu_custom_call.1} parent=11 // pred_check_branch
          %128 = sbr.rel (%p126) target = $region20
        $region19: #{tpu_custom_call.1} parent=11 // pred_region
          _
        $region20: #{tpu_custom_call.1} parent=11 // pred_fallthru
          _
      $region12: #{tpu_custom_call.1} parent=5 // pred_fallthru
        _
      %p129 = scmp.lt.s32.totalorder %s14, 2
      // Predicated region
      $region21: #{tpu_custom_call.1} parent=5 // pred_check
        %p130 = pneg %p129
      $region22: #{tpu_custom_call.1} parent=5 // pred_check_branch
        %132 = sbr.rel (%p130) target = $region24
      $region23: #{tpu_custom_call.1} parent=5 // pred_region
        // Predicated region
        $region25: #{tpu_custom_call.1} parent=23 // pred_check
          %p133 = pneg %p34
        $region26: #{tpu_custom_call.1} parent=23 // pred_check_branch
          %135 = sbr.rel (%p133) target = $region28
        $region27: #{tpu_custom_call.1} parent=23 // pred_region
          %p136 = scmp.lt.s32.totalorder %s14, 1
          %s137 = scalar_select %p136, %s14, 1
          %s138 = smul.addr %s137, 13
          %s139 = sadd.s32 %s138, 52
          %s140 = smul.addr %s139, 8
          %s141 = scalar_lea.vmem %s0, %s140
        $region28: #{tpu_custom_call.1} parent=23 // pred_fallthru
          _
      $region24: #{tpu_custom_call.1} parent=5 // pred_fallthru
        _
      %p142 = scmp.le.s32.totalorder 1, %s14
      %p143 = scmp.lt.s32.totalorder %s14, 3
      %p144 = pnand %p142, %p143
      %p145 = pneg %p144
      // Predicated region
      $region29: #{tpu_custom_call.1} parent=5 // pred_check
        _
      $region30: #{tpu_custom_call.1} parent=5 // pred_check_branch
        %147 = sbr.rel (%p144) target = $region32
      $region31: #{tpu_custom_call.1} parent=5 // pred_region
        %s148 = ssub.s32 %s14, 1
        %p149 = scmp.lt.s32.totalorder %s19, 1
        %s150 = scalar_select %p149, %s19, 1
        %s151 = smul.addr %s150, 13
        %s152 = sadd.s32 %s151, 52
        %s153 = smul.addr %s152, 8
        %s154 = scalar_lea.vmem %s0, %s153
        %p155 = pneg %p40
        %p156 = pneg %p37
        %p157 = pneg %p61
        %p158 = pneg %p58
        %p159 = pneg %p82
        %p160 = pneg %p79
        %p161 = pneg %p108
        %p162 = pneg %p105
        %s163 = sand.u32 %s95, 1
        %s164 = scalar_lea.sflag [#allocation4], %s163
        %s165 = sand.u32 %s95, 1
        %s166 = scalar_lea.vmem [#allocation3], %s165
        %p167 = scmp.lt.s32.totalorder %s19, 1
        %s168 = scalar_select %p167, %s19, 1
        %s169 = smul.addr %s168, 13
        %s170 = sadd.s32 %s169, 52
        %s171 = smul.addr %s170, 8
        %s172 = scalar_lea.vmem %s0, %s171
        %v173 = vld [vmem:[%s1] sm:$0x1]
        %v174 = vld [vmem:[%s172] sm:$0xff]
        %v175 = vld [vmem:[%s172 + $0x8] sm:$0xff]
        %v176 = vld [vmem:[%s172 + $0x10] sm:$0xff]
        %v177 = vld [vmem:[%s172 + $0x18] sm:$0xff]
        %v178 = vld [vmem:[%s172 + $0x20] sm:$0xff]
        %v179 = vld [vmem:[%s172 + $0x28] sm:$0xff]
        %v180 = vld [vmem:[%s172 + $0x30] sm:$0xff]
        %v181 = vld [vmem:[%s172 + $0x38] sm:$0xff]
        %v182 = vld [vmem:[%s172 + $0x40] sm:$0xff]
        %v183 = vld [vmem:[%s172 + $0x48] sm:$0xff]
        %v184 = vld [vmem:[%s172 + $0x50] sm:$0xff]
        %v185 = vld [vmem:[%s172 + $0x58] sm:$0xff]
        %v186 = vld [vmem:[%s172 + $0x60] sm:$0xf]
        %v187 = vld [vmem:[#allocation2] sm:$0x1]
        %189 = vset.pattern.permute.xlu0 0
        %190 = vperm.xlu0 %189, %v187
        %v191 = vpop.permute.xlu0 %190
        %v193 = vperm.slane %v191, 0
        %vm194 = vcmask 818176
        %v196 = vsel %vm194, %v173, 0
        %vm198 = vcmask 1043456
        %v200 = vsel %vm198, %v186, 0
        %202 = vmatpush.msra.mxu0 0.0
        %203 = vmatpush.msra.mxu0 0.0
        %204 = vmatpush.msra.mxu0 0.0
        %205 = vmatpush.msra.mxu0 %v200
        %206 = vmatpush.msra.mxu0 %v185
        %207 = vmatpush.msra.mxu0 %v184
        %208 = vmatpush.msra.mxu0 %v183
        %209 = vmatpush.msra.mxu0 %v182
        %210 = vmatpush.msra.mxu0 %v181
        %211 = vmatpush.msra.mxu0 %v180
        %212 = vmatpush.msra.mxu0 %v179
        %213 = vmatpush.msra.mxu0 %v178
        %214 = vmatpush.msra.mxu0 %v177
        %215 = vmatpush.msra.mxu0 %v176
        %216 = vmatpush.msra.mxu0 %v175
        %217 = vmatpush.msra.mxu0 %v174
        %218 = vmatmul.f32.gmra.mxu0 %v196
        %v219 = vpop.f32.mrf.mxu0
        %v220 = vadd.f32 %v193, %v219
        %221 = vdwg.mxu0
        %vm222 = vcmask 516096
        %223 = vst.msk [vmem:[%s166] sm:$0x1] %vm222, %v220
        %s224 = sand.u32 %s95, 1
        %s225 = scalar_lea.sflag [#allocation4], %s224
        %s226 = sand.u32 %s95, 1
        %s227 = scalar_lea.vmem [#allocation3], %s226
        // Predicated region
        $region33: #{tpu_custom_call.1} parent=31 // pred_check
          %p228 = pneg %p105
        $region34: #{tpu_custom_call.1} parent=31 // pred_check_branch
          %230 = sbr.rel (%p228) target = $region36
        $region35: #{tpu_custom_call.1} parent=31 // pred_region
          %232 = vsyncadd %s225, 0
          %s233 = scalar_lea.hbm %s3, %s19
          %s235 = sshll.u32 %s227, 4
          %s236 = int_to_ptr.vmem [resolvable:$true] %s235
          %s237 = sshll.u32 %s233, 4
          %s238 = int_to_ptr.hbm [resolvable:$true] %s237
          %240 = dma.vmem_to_hbm [thread:$0]  %s236, 16, %s238, %s225
        $region36: #{tpu_custom_call.1} parent=31 // pred_fallthru
          _
      $region32: #{tpu_custom_call.1} parent=5 // pred_fallthru
        _
      %p241 = scmp.le.s32.totalorder 2, %s14
      // Predicated region
      $region37: #{tpu_custom_call.1} parent=5 // pred_check
        %p242 = pneg %p241
      $region38: #{tpu_custom_call.1} parent=5 // pred_check_branch
        %244 = sbr.rel (%p242) target = $region40
      $region39: #{tpu_custom_call.1} parent=5 // pred_region
        %s245 = ssub.s32 %s14, 2
        // Predicated region
        $region41: #{tpu_custom_call.1} parent=39 // pred_check
          %p246 = pneg %p111
        $region42: #{tpu_custom_call.1} parent=39 // pred_check_branch
          %248 = sbr.rel (%p246) target = $region44
        $region43: #{tpu_custom_call.1} parent=39 // pred_region
          %s249 = sand.u32 %s96, 1
          %s250 = scalar_lea.sflag [#allocation4], %s249
          %s251 = sand.u32 %s96, 1
          %s252 = scalar_lea.vmem [#allocation3], %s251
          %254 = dma.done %s250, 16
        $region44: #{tpu_custom_call.1} parent=39 // pred_fallthru
          _
      $region40: #{tpu_custom_call.1} parent=5 // pred_fallthru
        _
    $region6: #{tpu_custom_call.1} parent=1 // loop_footer
      %s18 = sadd.s32 1, %s14
    $region7: #{tpu_custom_call.1} parent=1 // loop_footer_branch
      %13 = sbr.rel target = $region3
    $region8: #{tpu_custom_call.1} parent=1 // loop_exit
      _
    %255 = vsyncpa [#allocation4], 1
    %s256 = scalar_lea.sflag [#allocation4], 1
    %257 = vsyncpa %s256, 1

</llo_original>
